<compile_context>
chip_gen: v7x
topology: tpu7x:2x2x1
jax: 0.10.0
libtpu: 0.0.40
codegen_flags: <defaults>
</compile_context>

<pallas_src>
import jax
import jax.numpy as jnp
from jax.experimental import pallas as pl
from jax.experimental.pallas import tpu as pltpu


# branch_2 constant chain: sigmoid(x) * 7 * 5 * 5 * 6 * 7 * 8 * 10 / 5
SIG_SCALE = 7.0 * 5.0 * 5.0 * 6.0 * 7.0 * 8.0 * 10.0 / 5.0   # 117600.0
SIG_HALF = SIG_SCALE / 2.0                                    # 58800.0


def _round_up(x, m):
    return ((x + m - 1) // m) * m


def _tile_caps():
    """Per-generation (max_tm, max_tn, vmem_limit_bytes)."""
    try:
        kind = jax.devices()[0].device_kind.lower()
    except Exception:
        kind = ""
    if "v7" in kind:
        # v7x: 3.2 TB/s HBM but only 64 MiB physical VMEM.
        # 4 MiB tiles; 2in+2out double-buffered = 8x tile = 32 MiB < 48 MiB.
        return 512, 2048, 48 * 1024 * 1024
    # v5e / v6e (and fallback): 2 MiB tiles already ~85% of HBM roofline.
    # 2in+2out double-buffered = 16 MiB < 32 MiB limit (physical 128 MiB).
    return 256, 2048, 32 * 1024 * 1024


# ----------------------------------------------------------------------------
# Kernel.  params_ref is an SMEM (2, 9) table (scalar-prefetched); row 0 is the
# x sub-model, row 1 the y sub-model.
#
#   col 0: w1_0   1: w1_1   2: b1_0   3: b1_1                  Linear(1, 2)
#   col 4: c0 = 5*w3*w2_0   5: c1 = 5*w3*w2_1                  folded Lin(2,1)+Lin(1,1)
#   col 6: c2 = 5*(w3*b2 + b3) + 6 + ||branch_buff|| + SIG_HALF
#   col 7: final_mul   8: final_add_eff = ||branch_param||*final_mul + final_add
# ----------------------------------------------------------------------------
def branched_pair_kernel(params_ref, x_ref, y_ref, o1_ref, o2_ref):
    def branch(x, row):
        w1_0 = params_ref[row, 0]
        w1_1 = params_ref[row, 1]
        b1_0 = params_ref[row, 2]
        b1_1 = params_ref[row, 3]
        c0 = params_ref[row, 4]
        c1 = params_ref[row, 5]
        c2 = params_ref[row, 6]
        final_mul = params_ref[row, 7]
        final_add = params_ref[row, 8]

        # branch_1 (folded): 5*Lin(1,1)(Lin(2,1)(relu(Lin(1,2)(x)))) + 6
        h0 = jnp.maximum(w1_0 * x + b1_0, 0.0)
        h1 = jnp.maximum(w1_1 * x + b1_1, 0.0)
        # branch_2: SIG_SCALE*sigmoid(x) = SIG_HALF*tanh(x/2) + SIG_HALF
        # (the +SIG_HALF constant is folded into c2 on the host)
        sig_term = SIG_HALF * jnp.tanh(0.5 * x)
        combined = c0 * h0 + c1 * h1 + sig_term + c2
        return jnp.maximum(combined, 0.0) * final_mul + final_add

    o1_ref[...] = branch(x_ref[...], 0)
    o2_ref[...] = branch(y_ref[...], 1)


def run_branched_pair(x_flat, y_flat, params):
    """x_flat: (Nx,) f32, y_flat: (Ny,) f32, params: (2, 9) f32.

    Returns (out_x (Nx,), out_y (Ny,)) from a single fused pallas_call.
    """
    nx = x_flat.shape[0]
    ny = y_flat.shape[0]
    n = max(nx, ny)

    max_tm, max_tn, vmem_limit = _tile_caps()

    # Lane-dense slab layout: tn is a multiple of 128, rows a multiple of 8.
    tn = min(max_tn, _round_up(max(pl.cdiv(n, 8), 1), 128))
    rows = _round_up(pl.cdiv(n, tn), 8)
    tm = min(rows, max_tm)
    slab = rows * tn

    def to_slab(f):
        pad = slab - f.shape[0]
        if pad:
            f = jnp.pad(f, (0, pad))          # zero tail -> finite math in-kernel
        return f.reshape(rows, tn)            # contiguous reshape (free in XLA)

    xs = to_slab(x_flat)
    ys = to_slab(y_flat)

    spec = pl.BlockSpec((tm, tn), lambda i, p: (i, 0))
    grid = (pl.cdiv(rows, tm),)

    o1, o2 = pl.pallas_call(
        branched_pair_kernel,
        out_shape=(jax.ShapeDtypeStruct((rows, tn), jnp.float32),
                   jax.ShapeDtypeStruct((rows, tn), jnp.float32)),
        grid_spec=pltpu.PrefetchScalarGridSpec(
            num_scalar_prefetch=1,
            grid=grid,
            in_specs=[spec, spec],
            out_specs=[spec, spec],
        ),
        compiler_params=pltpu.CompilerParams(
            dimension_semantics=("parallel",),
            vmem_limit_bytes=vmem_limit),
    )(params, xs, ys)

    return o1.reshape(-1)[:nx], o2.reshape(-1)[:ny]


# ----------------------------------------------------------------------------
# Parameter setup (deterministic, mimics torch.nn.Linear default init bounds)
# ----------------------------------------------------------------------------
def init_linear(key, out_f, in_f):
    kw, kb = jax.random.split(key)
    bound = 1.0 / jnp.sqrt(jnp.float32(in_f))
    w = jax.random.uniform(kw, (out_f, in_f), jnp.float32, -bound, bound)
    b = jax.random.uniform(kb, (out_f,), jnp.float32, -bound, bound)
    return w, b


def make_branched_params(key, branch_buffer):
    k1, k2, k3 = jax.random.split(key, 3)
    w1, b1 = init_linear(k1, 2, 1)   # Linear(1, 2)
    w2, b2 = init_linear(k2, 1, 2)   # Linear(2, 1)
    w3, b3 = init_linear(k3, 1, 1)   # Linear(1, 1)
    branch_param = jnp.zeros_like(branch_buffer)
    return dict(w1=w1, b1=b1, w2=w2, b2=b2, w3=w3, b3=b3,
                branch_buff=branch_buffer, branch_param=branch_param)


def pack_params(bp, final_mul, final_add):
    """Host-side algebraic folding of the affine/constant chain -> 9 scalars."""
    w1, b1 = bp["w1"], bp["b1"]
    w2, b2 = bp["w2"], bp["b2"]
    w3, b3 = bp["w3"], bp["b3"]
    buff_norm = jnp.linalg.norm(bp["branch_buff"])
    param_norm = jnp.linalg.norm(bp["branch_param"])

    w3s = w3[0, 0]
    c0 = 5.0 * w3s * w2[0, 0]
    c1 = 5.0 * w3s * w2[0, 1]
    # branch_1_out = 5*lin + (2 + 1*8/2) = 5*lin + 6 ; buff_norm adds before ReLU;
    # + SIG_HALF from the tanh formulation of the sigmoid branch.
    c2 = 5.0 * (w3s * b2[0] + b3[0]) + 6.0 + buff_norm + SIG_HALF
    # out = relu(comb) + param_norm ; epilogue: out*final_mul + final_add
    final_add_eff = param_norm * final_mul + final_add

    return jnp.array(
        [w1[0, 0], w1[1, 0], b1[0], b1[1], c0, c1, c2, final_mul, final_add_eff],
        dtype=jnp.float32)


# ----------------------------------------------------------------------------
# Complex_Model wrapper
# ----------------------------------------------------------------------------
class ComplexModelPallas:
    def __init__(self, key):
        k1, k2 = jax.random.split(key)
        self.com_buff = jnp.ones((10, 10), jnp.float32)
        self.comm_param = jnp.zeros((10, 10), jnp.float32)
        self.sub_1 = make_branched_params(k1, jnp.ones((1, 1), jnp.float32))
        self.sub_2 = make_branched_params(k2, jnp.ones((2, 2), jnp.float32))

    def __call__(self, x, y):
        # x, y: (..., 1) float32 (trailing feature dim of the Linear(1, ...) stack)
        comm_param_norm = jnp.linalg.norm(self.comm_param)   # 0.0
        com_buff_norm = jnp.linalg.norm(self.com_buff)       # 10.0

        p1 = pack_params(self.sub_1, final_mul=comm_param_norm,
                         final_add=jnp.float32(0.0))
        p2 = pack_params(self.sub_2, final_mul=jnp.float32(1.0),
                         final_add=com_buff_norm)
        params = jnp.stack([p1, p2], axis=0)                 # (2, 9) SMEM table

        out1_flat, out2_flat = run_branched_pair(
            x.reshape(-1), y.reshape(-1), params)
        return out1_flat.reshape(x.shape), out2_flat.reshape(y.shape)


# ----------------------------------------------------------------------------
# Pure-JAX reference (mirrors the PyTorch forward exactly, no folding)
# ----------------------------------------------------------------------------
def branched_ref(bp, x):
    h = jnp.maximum(x @ bp["w1"].T + bp["b1"], 0.0)
    s = h @ bp["w2"].T + bp["b2"]
    lin = s @ bp["w3"].T + bp["b3"]
    b1o = lin * 5 + 2 + 1 * 8 / 2
    b2o = jax.nn.sigmoid(x) * 7 * 5 * 5 * 6 * 7 * 8 * 10 / 5
    comb = b1o + b2o + jnp.linalg.norm(bp["branch_buff"])
    return jnp.maximum(comb, 0.0) + jnp.linalg.norm(bp["branch_param"])


def complex_ref(model, x, y):
    o1 = branched_ref(model.sub_1, x) * jnp.linalg.norm(model.comm_param)
    o2 = branched_ref(model.sub_2, y) + jnp.linalg.norm(model.com_buff)
    return o1, o2


if __name__ == "__main__":
    key = jax.random.PRNGKey(0)
    km, kx, ky, ku, kv = jax.random.split(key, 5)

    model = ComplexModelPallas(km)

    # Small inputs consistent with nn.Linear(1, ...): trailing feature dim = 1.
    x = jax.random.normal(kx, (16, 256, 1), jnp.float32)
    y = jax.random.normal(ky, (16, 256, 1), jnp.float32)

    out1, out2 = model(x, y)
    jax.block_until_ready((out1, out2))

    ref1, ref2 = complex_ref(model, x, y)
    assert out1.shape == x.shape and out2.shape == y.shape
    assert jnp.allclose(out1, ref1, rtol=2e-3, atol=1e-2)
    assert jnp.allclose(out2, ref2, rtol=2e-3, atol=1e-2)

    # Unequal / ragged shapes still use the single fused launch (smaller input
    # zero-padded onto the shared lane-dense slab; padded tail never read back).
    u = jax.random.normal(ku, (10, 200, 1), jnp.float32)
    v = jax.random.normal(kv, (12, 300, 1), jnp.float32)
    o1, o2 = model(u, v)
    jax.block_until_ready((o1, o2))
    r1, r2 = complex_ref(model, u, v)
    assert o1.shape == u.shape and o2.shape == v.shape
    assert jnp.allclose(o1, r1, rtol=2e-3, atol=1e-2)
    assert jnp.allclose(o2, r2, rtol=2e-3, atol=1e-2)

    print("KERNEL_OK")
</pallas_src>

<mosaic_0001>
module attributes {stable_mosaic.version = 11 : i64} {
  func.func @branched_pair_kernel(%arg0: i32, %arg1: memref<2x9xf32, #tpu.memory_space<smem>>, %arg2: memref<8x512xf32, #tpu.memory_space<vmem>>, %arg3: memref<8x512xf32, #tpu.memory_space<vmem>>, %arg4: memref<8x512xf32, #tpu.memory_space<vmem>>, %arg5: memref<8x512xf32, #tpu.memory_space<vmem>>) attributes {dimension_semantics = [#tpu.dimension_semantics<parallel>], iteration_bounds = array<i64: 1>, scalar_prefetch = 1 : i64, scratch_operands = 0 : i64, tpu.core_type = #tpu.core_type<tc>, window_params = [{transform_indices = @transform_0, window_bounds = array<i64: 8, 512>}, {transform_indices = @transform_1, window_bounds = array<i64: 8, 512>}, {transform_indices = @transform_2, window_bounds = array<i64: 8, 512>}, {transform_indices = @transform_3, window_bounds = array<i64: 8, 512>}]} {
    %c0 = arith.constant 0 : index
    %c0_0 = arith.constant 0 : index
    %0 = vector.load %arg2[%c0, %c0_0] : memref<8x512xf32, #tpu.memory_space<vmem>>, vector<8x512xf32>
    %c0_1 = arith.constant 0 : index
    %c0_2 = arith.constant 0 : index
    %1 = memref.load %arg1[%c0_1, %c0_2] : memref<2x9xf32, #tpu.memory_space<smem>>
    %c0_3 = arith.constant 0 : index
    %c1 = arith.constant 1 : index
    %2 = memref.load %arg1[%c0_3, %c1] : memref<2x9xf32, #tpu.memory_space<smem>>
    %c0_4 = arith.constant 0 : index
    %c2 = arith.constant 2 : index
    %3 = memref.load %arg1[%c0_4, %c2] : memref<2x9xf32, #tpu.memory_space<smem>>
    %c0_5 = arith.constant 0 : index
    %c3 = arith.constant 3 : index
    %4 = memref.load %arg1[%c0_5, %c3] : memref<2x9xf32, #tpu.memory_space<smem>>
    %c0_6 = arith.constant 0 : index
    %c4 = arith.constant 4 : index
    %5 = memref.load %arg1[%c0_6, %c4] : memref<2x9xf32, #tpu.memory_space<smem>>
    %c0_7 = arith.constant 0 : index
    %c5 = arith.constant 5 : index
    %6 = memref.load %arg1[%c0_7, %c5] : memref<2x9xf32, #tpu.memory_space<smem>>
    %c0_8 = arith.constant 0 : index
    %c6 = arith.constant 6 : index
    %7 = memref.load %arg1[%c0_8, %c6] : memref<2x9xf32, #tpu.memory_space<smem>>
    %c0_9 = arith.constant 0 : index
    %c7 = arith.constant 7 : index
    %8 = memref.load %arg1[%c0_9, %c7] : memref<2x9xf32, #tpu.memory_space<smem>>
    %c0_10 = arith.constant 0 : index
    %c8 = arith.constant 8 : index
    %9 = memref.load %arg1[%c0_10, %c8] : memref<2x9xf32, #tpu.memory_space<smem>>
    %10 = vector.broadcast %1 : f32 to vector<8x512xf32>
    %11 = arith.mulf %10, %0 : vector<8x512xf32>
    %12 = vector.broadcast %3 : f32 to vector<8x512xf32>
    %13 = arith.addf %11, %12 : vector<8x512xf32>
    %cst = arith.constant 0.000000e+00 : f32
    %14 = vector.broadcast %cst : f32 to vector<8x512xf32>
    %15 = arith.maximumf %13, %14 : vector<8x512xf32>
    %16 = vector.broadcast %2 : f32 to vector<8x512xf32>
    %17 = arith.mulf %16, %0 : vector<8x512xf32>
    %18 = vector.broadcast %4 : f32 to vector<8x512xf32>
    %19 = arith.addf %17, %18 : vector<8x512xf32>
    %cst_11 = arith.constant 0.000000e+00 : f32
    %20 = vector.broadcast %cst_11 : f32 to vector<8x512xf32>
    %21 = arith.maximumf %19, %20 : vector<8x512xf32>
    %cst_12 = arith.constant 5.000000e-01 : f32
    %22 = vector.broadcast %cst_12 : f32 to vector<8x512xf32>
    %23 = arith.mulf %22, %0 : vector<8x512xf32>
    %24 = math.tanh %23 : vector<8x512xf32>
    %cst_13 = arith.constant 5.880000e+04 : f32
    %25 = vector.broadcast %cst_13 : f32 to vector<8x512xf32>
    %26 = arith.mulf %25, %24 : vector<8x512xf32>
    %27 = vector.broadcast %5 : f32 to vector<8x512xf32>
    %28 = arith.mulf %27, %15 : vector<8x512xf32>
    %29 = vector.broadcast %6 : f32 to vector<8x512xf32>
    %30 = arith.mulf %29, %21 : vector<8x512xf32>
    %31 = arith.addf %28, %30 : vector<8x512xf32>
    %32 = arith.addf %31, %26 : vector<8x512xf32>
    %33 = vector.broadcast %7 : f32 to vector<8x512xf32>
    %34 = arith.addf %32, %33 : vector<8x512xf32>
    %cst_14 = arith.constant 0.000000e+00 : f32
    %35 = vector.broadcast %cst_14 : f32 to vector<8x512xf32>
    %36 = arith.maximumf %34, %35 : vector<8x512xf32>
    %37 = vector.broadcast %8 : f32 to vector<8x512xf32>
    %38 = arith.mulf %36, %37 : vector<8x512xf32>
    %39 = vector.broadcast %9 : f32 to vector<8x512xf32>
    %40 = arith.addf %38, %39 : vector<8x512xf32>
    %c0_15 = arith.constant 0 : index
    %c0_16 = arith.constant 0 : index
    %41 = vector.load %arg4[%c0_15, %c0_16] : memref<8x512xf32, #tpu.memory_space<vmem>>, vector<8x512xf32>
    tpu.vector_store %arg4[%c0_15, %c0_16], %40 {strides = array<i32>} : memref<8x512xf32, #tpu.memory_space<vmem>>, vector<8x512xf32>,
    %c0_17 = arith.constant 0 : index
    %c0_18 = arith.constant 0 : index
    %42 = vector.load %arg3[%c0_17, %c0_18] : memref<8x512xf32, #tpu.memory_space<vmem>>, vector<8x512xf32>
    %c1_19 = arith.constant 1 : index
    %c0_20 = arith.constant 0 : index
    %43 = memref.load %arg1[%c1_19, %c0_20] : memref<2x9xf32, #tpu.memory_space<smem>>
    %c1_21 = arith.constant 1 : index
    %c1_22 = arith.constant 1 : index
    %44 = memref.load %arg1[%c1_21, %c1_22] : memref<2x9xf32, #tpu.memory_space<smem>>
    %c1_23 = arith.constant 1 : index
    %c2_24 = arith.constant 2 : index
    %45 = memref.load %arg1[%c1_23, %c2_24] : memref<2x9xf32, #tpu.memory_space<smem>>
    %c1_25 = arith.constant 1 : index
    %c3_26 = arith.constant 3 : index
    %46 = memref.load %arg1[%c1_25, %c3_26] : memref<2x9xf32, #tpu.memory_space<smem>>
    %c1_27 = arith.constant 1 : index
    %c4_28 = arith.constant 4 : index
    %47 = memref.load %arg1[%c1_27, %c4_28] : memref<2x9xf32, #tpu.memory_space<smem>>
    %c1_29 = arith.constant 1 : index
    %c5_30 = arith.constant 5 : index
    %48 = memref.load %arg1[%c1_29, %c5_30] : memref<2x9xf32, #tpu.memory_space<smem>>
    %c1_31 = arith.constant 1 : index
    %c6_32 = arith.constant 6 : index
    %49 = memref.load %arg1[%c1_31, %c6_32] : memref<2x9xf32, #tpu.memory_space<smem>>
    %c1_33 = arith.constant 1 : index
    %c7_34 = arith.constant 7 : index
    %50 = memref.load %arg1[%c1_33, %c7_34] : memref<2x9xf32, #tpu.memory_space<smem>>
    %c1_35 = arith.constant 1 : index
    %c8_36 = arith.constant 8 : index
    %51 = memref.load %arg1[%c1_35, %c8_36] : memref<2x9xf32, #tpu.memory_space<smem>>
    %52 = vector.broadcast %43 : f32 to vector<8x512xf32>
    %53 = arith.mulf %52, %42 : vector<8x512xf32>
    %54 = vector.broadcast %45 : f32 to vector<8x512xf32>
    %55 = arith.addf %53, %54 : vector<8x512xf32>
    %cst_37 = arith.constant 0.000000e+00 : f32
    %56 = vector.broadcast %cst_37 : f32 to vector<8x512xf32>
    %57 = arith.maximumf %55, %56 : vector<8x512xf32>
    %58 = vector.broadcast %44 : f32 to vector<8x512xf32>
    %59 = arith.mulf %58, %42 : vector<8x512xf32>
    %60 = vector.broadcast %46 : f32 to vector<8x512xf32>
    %61 = arith.addf %59, %60 : vector<8x512xf32>
    %cst_38 = arith.constant 0.000000e+00 : f32
    %62 = vector.broadcast %cst_38 : f32 to vector<8x512xf32>
    %63 = arith.maximumf %61, %62 : vector<8x512xf32>
    %cst_39 = arith.constant 5.000000e-01 : f32
    %64 = vector.broadcast %cst_39 : f32 to vector<8x512xf32>
    %65 = arith.mulf %64, %42 : vector<8x512xf32>
    %66 = math.tanh %65 : vector<8x512xf32>
    %cst_40 = arith.constant 5.880000e+04 : f32
    %67 = vector.broadcast %cst_40 : f32 to vector<8x512xf32>
    %68 = arith.mulf %67, %66 : vector<8x512xf32>
    %69 = vector.broadcast %47 : f32 to vector<8x512xf32>
    %70 = arith.mulf %69, %57 : vector<8x512xf32>
    %71 = vector.broadcast %48 : f32 to vector<8x512xf32>
    %72 = arith.mulf %71, %63 : vector<8x512xf32>
    %73 = arith.addf %70, %72 : vector<8x512xf32>
    %74 = arith.addf %73, %68 : vector<8x512xf32>
    %75 = vector.broadcast %49 : f32 to vector<8x512xf32>
    %76 = arith.addf %74, %75 : vector<8x512xf32>
    %cst_41 = arith.constant 0.000000e+00 : f32
    %77 = vector.broadcast %cst_41 : f32 to vector<8x512xf32>
    %78 = arith.maximumf %76, %77 : vector<8x512xf32>
    %79 = vector.broadcast %50 : f32 to vector<8x512xf32>
    %80 = arith.mulf %78, %79 : vector<8x512xf32>
    %81 = vector.broadcast %51 : f32 to vector<8x512xf32>
    %82 = arith.addf %80, %81 : vector<8x512xf32>
    %c0_42 = arith.constant 0 : index
    %c0_43 = arith.constant 0 : index
    %83 = vector.load %arg5[%c0_42, %c0_43] : memref<8x512xf32, #tpu.memory_space<vmem>>, vector<8x512xf32>
    tpu.vector_store %arg5[%c0_42, %c0_43], %82 {strides = array<i32>} : memref<8x512xf32, #tpu.memory_space<vmem>>, vector<8x512xf32>,
    return
  }
  func.func @transform_0(%arg0: i32, %arg1: memref<2x9xf32, #tpu.memory_space<smem>>) -> (i32, i32) {
    %c0_i32 = arith.constant 0 : i32
    %c0_i32_0 = arith.constant 0 : i32
    return %arg0, %c0_i32 : i32, i32
  }
  func.func @transform_1(%arg0: i32, %arg1: memref<2x9xf32, #tpu.memory_space<smem>>) -> (i32, i32) {
    %c0_i32 = arith.constant 0 : i32
    %c0_i32_0 = arith.constant 0 : i32
    return %arg0, %c0_i32 : i32, i32
  }
  func.func @transform_2(%arg0: i32, %arg1: memref<2x9xf32, #tpu.memory_space<smem>>) -> (i32, i32) {
    %c0_i32 = arith.constant 0 : i32
    %c0_i32_0 = arith.constant 0 : i32
    return %arg0, %c0_i32 : i32, i32
  }
  func.func @transform_3(%arg0: i32, %arg1: memref<2x9xf32, #tpu.memory_space<smem>>) -> (i32, i32) {
    %c0_i32 = arith.constant 0 : i32
    %c0_i32_0 = arith.constant 0 : i32
    return %arg0, %c0_i32 : i32, i32
  }
}

</mosaic_0001>

<llo_original>
// kernel: tpu_custom_call.1
$region0: #{tpu_custom_call.1}
  #allocation0 [shape = 'u32[]', space=smem, size = 0x4, offset = 0x4, fixed_abs, tag = 'smem constant byte address 0x4 - core index']
  #allocation1 [shape = 'u32[144,128]{1,0:T(1,128)}', space=vmem, size = 0x12000, scoped, tag = 'internal scratch']
  #allocation2 [shape = 's32[1]{0}', space=sflag, size = 0x4, scoped, tag = 'scoped memory for tpu_custom_call.1']
  #allocation3 [shape = 'u8[1024]{0}', space=smem, size = 0x400, scoped, tag = 'prefetched SMEM operand 0']
  %s0 = inlined_call_operand.hbm [shape: f32[2,9], index: 0, kind: input, shape index: {}]
  %s1 = inlined_call_operand.hbm [shape: f32[8,512], index: 1, kind: input, shape index: {}]
  %s2 = inlined_call_operand.hbm [shape: f32[8,512], index: 2, kind: input, shape index: {}]
  %s3 = inlined_call_operand.hbm [shape: f32[8,512], index: 3, kind: output, shape index: {0}]
  %s4 = inlined_call_operand.hbm [shape: f32[8,512], index: 4, kind: output, shape index: {1}]
  %5 = xla_tuple %s3, %s4
  %s6 = sld [smem:[#allocation0]]
  $region34: #{tpu_custom_call.1} parent=0
    _
  %s8 = ssub.s32 1, %s6
  %s9 = scalar_select 0, %s8, %s6
  %11 = dma.hbm_to_smem %s0, 32, [#allocation3], [#allocation2]
  %12 = dma.done [#allocation2], 32
  %13 = sfence
  $region1: #{tpu_custom_call.1} parent=0
    #allocation4 [shape = 'u8[16384]{0}', space=vmem, size = 0x4000, scoped, tag = 'input window, operand 1, single buffered']
    #allocation5 [shape = 's32[1]{0}', space=sflag, size = 0x4, scoped, tag = 'scoped memory for tpu_custom_call.1']
    #allocation6 [shape = 's32[1]{0}', space=sflag, size = 0x4, scoped, tag = 'scoped memory for tpu_custom_call.1']
    #allocation7 [shape = 'u8[16384]{0}', space=vmem, size = 0x4000, scoped, tag = 'input window, operand 2, single buffered']
    #allocation8 [shape = 's32[1]{0}', space=sflag, size = 0x4, scoped, tag = 'scoped memory for tpu_custom_call.1']
    #allocation9 [shape = 'u8[16384]{0}', space=vmem, size = 0x4000, scoped, tag = 'output window, operand 0, single buffered']
    #allocation10 [shape = 'u8[16384]{0}', space=vmem, size = 0x4000, scoped, tag = 'output window, operand 1, single buffered']
    #allocation11 [shape = 's32[1]{0}', space=sflag, size = 0x4, scoped, tag = 'scoped memory for tpu_custom_call.1']
    %14 = vsyncpa [#allocation5], 0
    %15 = vsyncpa [#allocation8], 0
    %16 = vsyncpa [#allocation6], 0
    %17 = vsyncpa [#allocation11], 0
    // Predicated region
    $region2: #{tpu_custom_call.1} parent=1 // pred_check
      _
    $region3: #{tpu_custom_call.1} parent=1 // pred_check_branch
      %19 = sbr.rel (0) target = $region5
    $region4: #{tpu_custom_call.1} parent=1 // pred_region
      %s21 = ssub.s32 512, 512
      %22 = vsyncadd [#allocation5], %s21
      %s24 = sshll.u32 [#allocation4], 4
      %s25 = int_to_ptr.vmem [resolvable:$true] %s24
      %27 = dma.hbm_to_vmem [thread:$0]  %s1, 512, %s25, [#allocation5]
    $region5: #{tpu_custom_call.1} parent=1 // pred_fallthru
      _
    // Predicated region
    $region6: #{tpu_custom_call.1} parent=1 // pred_check
      _
    $region7: #{tpu_custom_call.1} parent=1 // pred_check_branch
      %29 = sbr.rel (0) target = $region9
    $region8: #{tpu_custom_call.1} parent=1 // pred_region
      %s31 = ssub.s32 512, 512
      %32 = vsyncadd [#allocation8], %s31
      %s34 = sshll.u32 [#allocation7], 4
      %s35 = int_to_ptr.vmem [resolvable:$true] %s34
      %37 = dma.hbm_to_vmem [thread:$0]  %s2, 512, %s35, [#allocation8]
    $region9: #{tpu_custom_call.1} parent=1 // pred_fallthru
      _
    // Predicated region
    $region10: #{tpu_custom_call.1} parent=1 // pred_check
      _
    $region11: #{tpu_custom_call.1} parent=1 // pred_check_branch
      %39 = sbr.rel (0) target = $region13
    $region12: #{tpu_custom_call.1} parent=1 // pred_region
      %40 = dma.done [#allocation5], 512
    $region13: #{tpu_custom_call.1} parent=1 // pred_fallthru
      _
    // Predicated region
    $region14: #{tpu_custom_call.1} parent=1 // pred_check
      _
    $region15: #{tpu_custom_call.1} parent=1 // pred_check_branch
      %42 = sbr.rel (0) target = $region17
    $region16: #{tpu_custom_call.1} parent=1 // pred_region
      %43 = dma.done [#allocation8], 512
    $region17: #{tpu_custom_call.1} parent=1 // pred_fallthru
      _
    %v44 = vld [vmem:[#allocation4] sm:$0xff]
    %v45 = vld [vmem:[#allocation4 + $0x8] sm:$0xff]
    %v46 = vld [vmem:[#allocation4 + $0x10] sm:$0xff]
    %v47 = vld [vmem:[#allocation4 + $0x18] sm:$0xff]
    %s48 = sld [smem:[#allocation3]]
    %s49 = sld [smem:[#allocation3 + $0x1]]
    %s50 = sld [smem:[#allocation3 + $0x2]]
    %s51 = sld [smem:[#allocation3 + $0x3]]
    %s52 = sld [smem:[#allocation3 + $0x4]]
    %s53 = sld [smem:[#allocation3 + $0x5]]
    %s54 = sld [smem:[#allocation3 + $0x6]]
    %s55 = sld [smem:[#allocation3 + $0x7]]
    %s56 = sld [smem:[#allocation3 + $0x8]]
    %v57 = vstv %s48
    %v58 = vmul.f32 %v57, %v44
    %v59 = vmul.f32 %v57, %v45
    %v60 = vmul.f32 %v57, %v46
    %v61 = vmul.f32 %v57, %v47
    %v62 = vstv %s50
    %v63 = vadd.f32 %v58, %v62
    %v64 = vadd.f32 %v59, %v62
    %v65 = vadd.f32 %v60, %v62
    %v66 = vadd.f32 %v61, %v62
    %v67 = vmax.f32 %v63, 0.0
    %v68 = vmax.f32 %v64, 0.0
    %v69 = vmax.f32 %v65, 0.0
    %v70 = vmax.f32 %v66, 0.0
    %v71 = vstv %s49
    %v72 = vmul.f32 %v71, %v44
    %v73 = vmul.f32 %v71, %v45
    %v74 = vmul.f32 %v71, %v46
    %v75 = vmul.f32 %v71, %v47
    %v76 = vstv %s51
    %v77 = vadd.f32 %v72, %v76
    %v78 = vadd.f32 %v73, %v76
    %v79 = vadd.f32 %v74, %v76
    %v80 = vadd.f32 %v75, %v76
    %v81 = vmax.f32 %v77, 0.0
    %v82 = vmax.f32 %v78, 0.0
    %v83 = vmax.f32 %v79, 0.0
    %v84 = vmax.f32 %v80, 0.0
    %v85 = vmul.f32 %v44, 0.5
    %v86 = vmul.f32 %v45, 0.5
    %v87 = vmul.f32 %v46, 0.5
    %v88 = vmul.f32 %v47, 0.5
    %v89 = vtanh.pop %v85
    %v90 = vtanh.pop %v86
    %v91 = vtanh.pop %v87
    %v92 = vtanh.pop %v88
    %v93 = vmul.f32 %v89, 58800.0
    %v94 = vmul.f32 %v90, 58800.0
    %v95 = vmul.f32 %v91, 58800.0
    %v96 = vmul.f32 %v92, 58800.0
    %v97 = vstv %s52
    %v98 = vmul.f32 %v97, %v67
    %v99 = vmul.f32 %v97, %v68
    %v100 = vmul.f32 %v97, %v69
    %v101 = vmul.f32 %v97, %v70
    %v102 = vstv %s53
    %v103 = vmul.f32 %v102, %v81
    %v104 = vmul.f32 %v102, %v82
    %v105 = vmul.f32 %v102, %v83
    %v106 = vmul.f32 %v102, %v84
    %v107 = vadd.f32 %v98, %v103
    %v108 = vadd.f32 %v99, %v104
    %v109 = vadd.f32 %v100, %v105
    %v110 = vadd.f32 %v101, %v106
    %v111 = vadd.f32 %v107, %v93
    %v112 = vadd.f32 %v108, %v94
    %v113 = vadd.f32 %v109, %v95
    %v114 = vadd.f32 %v110, %v96
    %v115 = vstv %s54
    %v116 = vadd.f32 %v111, %v115
    %v117 = vadd.f32 %v112, %v115
    %v118 = vadd.f32 %v113, %v115
    %v119 = vadd.f32 %v114, %v115
    %v120 = vmax.f32 %v116, 0.0
    %v121 = vmax.f32 %v117, 0.0
    %v122 = vmax.f32 %v118, 0.0
    %v123 = vmax.f32 %v119, 0.0
    %v124 = vstv %s55
    %v125 = vmul.f32 %v120, %v124
    %v126 = vmul.f32 %v121, %v124
    %v127 = vmul.f32 %v122, %v124
    %v128 = vmul.f32 %v123, %v124
    %v129 = vstv %s56
    %v130 = vadd.f32 %v125, %v129
    %v131 = vadd.f32 %v126, %v129
    %v132 = vadd.f32 %v127, %v129
    %v133 = vadd.f32 %v128, %v129
    %134 = vst [vmem:[#allocation9] sm:$0xff] %v130
    %135 = vst [vmem:[#allocation9 + $0x8] sm:$0xff] %v131
    %136 = vst [vmem:[#allocation9 + $0x10] sm:$0xff] %v132
    %137 = vst [vmem:[#allocation9 + $0x18] sm:$0xff] %v133
    %v138 = vld [vmem:[#allocation7] sm:$0xff]
    %v139 = vld [vmem:[#allocation7 + $0x8] sm:$0xff]
    %v140 = vld [vmem:[#allocation7 + $0x10] sm:$0xff]
    %v141 = vld [vmem:[#allocation7 + $0x18] sm:$0xff]
    %s142 = sld [smem:[#allocation3 + $0x80]]
    %s143 = sld [smem:[#allocation3 + $0x81]]
    %s144 = sld [smem:[#allocation3 + $0x82]]
    %s145 = sld [smem:[#allocation3 + $0x83]]
    %s146 = sld [smem:[#allocation3 + $0x84]]
    %s147 = sld [smem:[#allocation3 + $0x85]]
    %s148 = sld [smem:[#allocation3 + $0x86]]
    %s149 = sld [smem:[#allocation3 + $0x87]]
    %s150 = sld [smem:[#allocation3 + $0x88]]
    %v151 = vstv %s142
    %v152 = vmul.f32 %v151, %v138
    %v153 = vmul.f32 %v151, %v139
    %v154 = vmul.f32 %v151, %v140
    %v155 = vmul.f32 %v151, %v141
    %v156 = vstv %s144
    %v157 = vadd.f32 %v152, %v156
    %v158 = vadd.f32 %v153, %v156
    %v159 = vadd.f32 %v154, %v156
    %v160 = vadd.f32 %v155, %v156
    %v161 = vmax.f32 %v157, 0.0
    %v162 = vmax.f32 %v158, 0.0
    %v163 = vmax.f32 %v159, 0.0
    %v164 = vmax.f32 %v160, 0.0
    %v165 = vstv %s143
    %v166 = vmul.f32 %v165, %v138
    %v167 = vmul.f32 %v165, %v139
    %v168 = vmul.f32 %v165, %v140
    %v169 = vmul.f32 %v165, %v141
    %v170 = vstv %s145
    %v171 = vadd.f32 %v166, %v170
    %v172 = vadd.f32 %v167, %v170
    %v173 = vadd.f32 %v168, %v170
    %v174 = vadd.f32 %v169, %v170
    %v175 = vmax.f32 %v171, 0.0
    %v176 = vmax.f32 %v172, 0.0
    %v177 = vmax.f32 %v173, 0.0
    %v178 = vmax.f32 %v174, 0.0
    %v179 = vmul.f32 %v138, 0.5
    %v180 = vmul.f32 %v139, 0.5
    %v181 = vmul.f32 %v140, 0.5
    %v182 = vmul.f32 %v141, 0.5
    %v183 = vtanh.pop %v179
    %v184 = vtanh.pop %v180
    %v185 = vtanh.pop %v181
    %v186 = vtanh.pop %v182
    %v187 = vmul.f32 %v183, 58800.0
    %v188 = vmul.f32 %v184, 58800.0
    %v189 = vmul.f32 %v185, 58800.0
    %v190 = vmul.f32 %v186, 58800.0
    %v191 = vstv %s146
    %v192 = vmul.f32 %v191, %v161
    %v193 = vmul.f32 %v191, %v162
    %v194 = vmul.f32 %v191, %v163
    %v195 = vmul.f32 %v191, %v164
    %v196 = vstv %s147
    %v197 = vmul.f32 %v196, %v175
    %v198 = vmul.f32 %v196, %v176
    %v199 = vmul.f32 %v196, %v177
    %v200 = vmul.f32 %v196, %v178
    %v201 = vadd.f32 %v192, %v197
    %v202 = vadd.f32 %v193, %v198
    %v203 = vadd.f32 %v194, %v199
    %v204 = vadd.f32 %v195, %v200
    %v205 = vadd.f32 %v201, %v187
    %v206 = vadd.f32 %v202, %v188
    %v207 = vadd.f32 %v203, %v189
    %v208 = vadd.f32 %v204, %v190
    %v209 = vstv %s148
    %v210 = vadd.f32 %v205, %v209
    %v211 = vadd.f32 %v206, %v209
    %v212 = vadd.f32 %v207, %v209
    %v213 = vadd.f32 %v208, %v209
    %v214 = vmax.f32 %v210, 0.0
    %v215 = vmax.f32 %v211, 0.0
    %v216 = vmax.f32 %v212, 0.0
    %v217 = vmax.f32 %v213, 0.0
    %v218 = vstv %s149
    %v219 = vmul.f32 %v214, %v218
    %v220 = vmul.f32 %v215, %v218
    %v221 = vmul.f32 %v216, %v218
    %v222 = vmul.f32 %v217, %v218
    %v223 = vstv %s150
    %v224 = vadd.f32 %v219, %v223
    %v225 = vadd.f32 %v220, %v223
    %v226 = vadd.f32 %v221, %v223
    %v227 = vadd.f32 %v222, %v223
    %228 = vst [vmem:[#allocation10] sm:$0xff] %v224
    %229 = vst [vmem:[#allocation10 + $0x8] sm:$0xff] %v225
    %230 = vst [vmem:[#allocation10 + $0x10] sm:$0xff] %v226
    %231 = vst [vmem:[#allocation10 + $0x18] sm:$0xff] %v227
    // Predicated region
    $region18: #{tpu_custom_call.1} parent=1 // pred_check
      _
    $region19: #{tpu_custom_call.1} parent=1 // pred_check_branch
      %233 = sbr.rel (0) target = $region21
    $region20: #{tpu_custom_call.1} parent=1 // pred_region
      %s235 = ssub.s32 512, 512
      %236 = vsyncadd [#allocation6], %s235
      %s238 = sshll.u32 [#allocation9], 4
      %s239 = int_to_ptr.vmem [resolvable:$true] %s238
      %241 = dma.vmem_to_hbm [thread:$0]  %s239, 512, %s3, [#allocation6]
    $region21: #{tpu_custom_call.1} parent=1 // pred_fallthru
      _
    // Predicated region
    $region22: #{tpu_custom_call.1} parent=1 // pred_check
      _
    $region23: #{tpu_custom_call.1} parent=1 // pred_check_branch
      %243 = sbr.rel (0) target = $region25
    $region24: #{tpu_custom_call.1} parent=1 // pred_region
      %s245 = ssub.s32 512, 512
      %246 = vsyncadd [#allocation11], %s245
      %s248 = sshll.u32 [#allocation10], 4
      %s249 = int_to_ptr.vmem [resolvable:$true] %s248
      %251 = dma.vmem_to_hbm [thread:$0]  %s249, 512, %s4, [#allocation11]
    $region25: #{tpu_custom_call.1} parent=1 // pred_fallthru
      _
    // Predicated region
    $region26: #{tpu_custom_call.1} parent=1 // pred_check
      _
    $region27: #{tpu_custom_call.1} parent=1 // pred_check_branch
      %253 = sbr.rel (0) target = $region29
    $region28: #{tpu_custom_call.1} parent=1 // pred_region
      %254 = dma.done [#allocation6], 512
    $region29: #{tpu_custom_call.1} parent=1 // pred_fallthru
      _
    // Predicated region
    $region30: #{tpu_custom_call.1} parent=1 // pred_check
      _
    $region31: #{tpu_custom_call.1} parent=1 // pred_check_branch
      %256 = sbr.rel (0) target = $region33
    $region32: #{tpu_custom_call.1} parent=1 // pred_region
      %257 = dma.done [#allocation11], 512
    $region33: #{tpu_custom_call.1} parent=1 // pred_fallthru
      _
    %258 = vsyncpa [#allocation5], 1
    %259 = vsyncpa [#allocation8], 1
    %260 = vsyncpa [#allocation6], 1
    %261 = vsyncpa [#allocation11], 1

</llo_original>
